<compile_context>
chip_gen: v6e
topology: v6e:2x2x1
jax: 0.10.0
libtpu: 0.0.40
codegen_flags: <defaults>
</compile_context>

<pallas_src>
import jax
import jax.numpy as jnp
from jax.experimental import pallas as pl

BN_EPS = 1e-5
_LANE = 128


def _round_up(n, m):
    return ((n + m - 1) // m) * m


def _mcvc2_kernel(x_ref, eps_ref,
                  w1_ref, b1_ref, w2_ref, b2_ref, w3_ref, b3_ref,
                  wh_ref, bh_ref,
                  w4_ref, b4_ref, w5_ref, b5_ref, w6_ref, b6_ref,
                  out_ref):
    """Single invocation: static loop over channels, classifier batched once."""
    C, B, _ = x_ref.shape
    z_dim = wh_ref.shape[-1] // 2

    # bf16 operands for the MXU, fp32 accumulation; bias add / relu in fp32.
    def dense(a, w, b, relu):
        y = jnp.dot(a.astype(jnp.bfloat16), w,
                    preferred_element_type=jnp.float32) + b
        return jnp.maximum(y, 0.0) if relu else y

    mus, scales, zs = [], [], []
    for c in range(C):                                    # compile-time loop
        x = x_ref[c].astype(jnp.float32)                  # (B, D)

        # BatchNorm1d(affine=False), training mode: batch mean, biased variance.
        mean = jnp.mean(x, axis=0, keepdims=True)
        xc = x - mean                                     # reused for var + norm
        var = jnp.mean(xc * xc, axis=0, keepdims=True)
        h = xc * jax.lax.rsqrt(var + BN_EPS)

        # per-channel encoder MLP
        h = dense(h, w1_ref[c], b1_ref[c], True)
        h = dense(h, w2_ref[c], b2_ref[c], True)
        h = dense(h, w3_ref[c], b3_ref[c], True)

        # fused mu | log_var head: one matmul, split the result.
        head = dense(h, wh_ref[c], bh_ref[c], False)      # (B, 2*z_dim)
        mu = head[:, :z_dim]
        scale = jnp.exp(0.5 * head[:, z_dim:])            # == exp(log_var)**0.5

        # reparameterized sample: Normal(mu, scale).rsample()
        z = mu + scale * eps_ref[c]

        mus.append(mu)
        scales.append(scale)
        zs.append(z)

    mu_all = jnp.concatenate(mus, axis=0)                 # (C*B, z_dim)
    scale_all = jnp.concatenate(scales, axis=0)
    z_all = jnp.concatenate(zs, axis=0)

    # shared classifier: run ONCE with M = C*B (weights used once each).
    h4 = dense(z_all, w4_ref[...], b4_ref[...], True)
    h5 = dense(h4, w5_ref[...], b5_ref[...], True)
    pyz_all = jax.nn.sigmoid(dense(h5, w6_ref[...], b6_ref[...], False))

    # lane-dense output slab: mu | scale | z | pyz | zero-pad -> one store.
    used = 3 * z_dim + pyz_all.shape[-1]
    pad = out_ref.shape[-1] - used
    parts = [mu_all, scale_all, z_all, pyz_all]
    if pad > 0:
        parts.append(jnp.zeros((mu_all.shape[0], pad), jnp.float32))
    out_ref[...] = jnp.concatenate(parts, axis=-1)


@jax.jit
def _mcvc2_fused(x_stack, key, enc, clf):
    """Fused forward for all channels. x_stack: (C, B, D). Returns stacked outs."""
    C, B, _ = x_stack.shape
    z_dim = enc["bh"].shape[-1] // 2
    n_lab = clf["w6"].shape[-1]
    out_pad = _round_up(3 * z_dim + n_lab, _LANE)

    # One RNG op for all channels, fused into the same XLA program.
    eps = jax.random.normal(key, (C, B, z_dim), dtype=jnp.float32)

    # No grid: one kernel invocation; every (tiny) operand is a whole-array
    # VMEM block (default BlockSpec), so there is no per-step/pipeline overhead.
    slab = pl.pallas_call(
        _mcvc2_kernel,
        out_shape=jax.ShapeDtypeStruct((C * B, out_pad), jnp.float32),
    )(x_stack, eps,
      enc["w1"], enc["b1"], enc["w2"], enc["b2"], enc["w3"], enc["b3"],
      enc["wh"], enc["bh"],
      clf["w4"], clf["b4"], clf["w5"], clf["b5"], clf["w6"], clf["b6"])

    slab = slab.reshape(C, B, out_pad)
    mu = slab[..., 0:z_dim]
    scale = slab[..., z_dim:2 * z_dim]
    z = slab[..., 2 * z_dim:3 * z_dim]
    pyz = slab[..., 3 * z_dim:3 * z_dim + n_lab]
    return mu, scale, z, pyz


def mcvc2_forward(xs, ys, params, key):
    """Full MCVC_2.forward.

    Returns {'x','y','qzx','z','pyz'} with stacked (C, B, ...) arrays:
    qzx = (mu, scale); index channel c as mu[c] / z[c] / pyz[c].
    (Stacked outputs avoid 3*C extra host-side slice dispatches.)
    """
    # The torch module shares one BatchNorm1d(x_dims[0]) across channels, so all
    # channel inputs must have the same feature dim -> stacking is always legal.
    x_stack = jnp.stack(xs, axis=0)                       # (C, B, D)
    mu, scale, z, pyz = _mcvc2_fused(x_stack, key, params["enc"], params["clf"])
    return {"x": xs, "y": ys, "qzx": (mu, scale), "z": z, "pyz": pyz}


def _linear_params(key, fan_in, fan_out):
    """Deterministic torch-Linear-like init (uniform(-1/sqrt(fan_in), ...))."""
    kw, kb = jax.random.split(key)
    bound = 1.0 / jnp.sqrt(jnp.float32(fan_in))
    w = jax.random.uniform(kw, (fan_in, fan_out), jnp.float32, -bound, bound)
    b = jax.random.uniform(kb, (1, fan_out), jnp.float32, -bound, bound)
    return w, b


def init_mcvc2_params(key, x_dims, z_dim, n_labels, h1, h2, h3):
    assert len(set(x_dims)) == 1, "shared BatchNorm1d(x_dims[0]) requires equal x_dims"
    C = len(x_dims)
    n_lab = max(n_labels)
    keys = jax.random.split(key, C * 5 + 3)
    ki = iter(range(len(keys)))

    layer_dims = {"1": (x_dims[0], h1), "2": (h1, h2), "3": (h2, h3),
                  "mu": (h3, z_dim), "lv": (h3, z_dim)}
    ws = {name: [] for name in layer_dims}
    bs = {name: [] for name in layer_dims}
    for _ in range(C):
        for name in ("1", "2", "3", "mu", "lv"):
            w, b = _linear_params(keys[next(ki)], *layer_dims[name])
            ws[name].append(w)
            bs[name].append(b)

    enc = {}
    for name in ("1", "2", "3"):
        # weights stacked (C, in, out), stored bf16 for MXU + halved HBM/VMEM bytes
        enc["w" + name] = jnp.stack(ws[name]).astype(jnp.bfloat16)
        enc["b" + name] = jnp.stack(bs[name])              # (C, 1, out) fp32
    # fused mu|log_var head: (C, h3, 2*z_dim) bf16 / (C, 1, 2*z_dim) fp32
    wh = [jnp.concatenate([ws["mu"][c], ws["lv"][c]], axis=-1) for c in range(C)]
    bh = [jnp.concatenate([bs["mu"][c], bs["lv"][c]], axis=-1) for c in range(C)]
    enc["wh"] = jnp.stack(wh).astype(jnp.bfloat16)
    enc["bh"] = jnp.stack(bh)

    w4, b4 = _linear_params(keys[next(ki)], z_dim, z_dim)
    w5, b5 = _linear_params(keys[next(ki)], z_dim, z_dim)
    w6, b6 = _linear_params(keys[next(ki)], z_dim, n_lab)
    clf = dict(w4=w4.astype(jnp.bfloat16), b4=b4,
               w5=w5.astype(jnp.bfloat16), b5=b5,
               w6=w6.astype(jnp.bfloat16), b6=b6)
    return {"enc": enc, "clf": clf}


if __name__ == "__main__":
    # Small, module-consistent shapes.
    batch = 8
    x_dims = [32, 32]          # bn is shared with num_features=x_dims[0] -> equal dims
    z_dim = 16
    n_labels = [4, 3]          # module uses max(n_labels) = 4 classifier outputs
    h_dim1, h_dim2, h_dim3 = 32, 32, 32

    root = jax.random.PRNGKey(0)
    k_param, k_x, k_y, k_eps = jax.random.split(root, 4)

    params = init_mcvc2_params(k_param, x_dims, z_dim, n_labels,
                               h_dim1, h_dim2, h_dim3)

    xk = jax.random.split(k_x, len(x_dims))
    xs = [jax.random.normal(xk[ch], (batch, x_dims[ch]), dtype=jnp.float32)
          for ch in range(len(x_dims))]
    # one-hot labels per channel (only passed through the forward, unused in compute)
    yk = jax.random.split(k_y, len(x_dims))
    ys = [jax.nn.one_hot(
              jax.random.randint(yk[ch], (batch,), 0, n_labels[ch]),
              max(n_labels), dtype=jnp.float32)
          for ch in range(len(x_dims))]

    out = mcvc2_forward(xs, ys, params, k_eps)
    jax.block_until_ready(out["pyz"])
    jax.block_until_ready(out["z"])

    # sanity on shapes and values
    C = len(x_dims)
    mu, scale = out["qzx"]
    assert out["pyz"].shape == (C, batch, max(n_labels))
    assert out["z"].shape == (C, batch, z_dim)
    assert mu.shape == (C, batch, z_dim) and scale.shape == (C, batch, z_dim)
    assert bool(jnp.all(jnp.isfinite(out["z"])))
    assert bool(jnp.all((out["pyz"] > 0.0) & (out["pyz"] < 1.0)))
    assert bool(jnp.all(scale > 0.0))   # scale strictly positive

    print("KERNEL_OK")
</pallas_src>

<mosaic_0001>
module attributes {stable_mosaic.version = 11 : i64} {
  func.func @_mcvc2_kernel(%arg0: memref<2x8x32xf32, #tpu.memory_space<vmem>>, %arg1: memref<2x8x16xf32, #tpu.memory_space<vmem>>, %arg2: memref<2x32x32xbf16, #tpu.memory_space<vmem>>, %arg3: memref<2x1x32xf32, #tpu.memory_space<vmem>>, %arg4: memref<2x32x32xbf16, #tpu.memory_space<vmem>>, %arg5: memref<2x1x32xf32, #tpu.memory_space<vmem>>, %arg6: memref<2x32x32xbf16, #tpu.memory_space<vmem>>, %arg7: memref<2x1x32xf32, #tpu.memory_space<vmem>>, %arg8: memref<2x32x32xbf16, #tpu.memory_space<vmem>>, %arg9: memref<2x1x32xf32, #tpu.memory_space<vmem>>, %arg10: memref<16x16xbf16, #tpu.memory_space<vmem>>, %arg11: memref<1x16xf32, #tpu.memory_space<vmem>>, %arg12: memref<16x16xbf16, #tpu.memory_space<vmem>>, %arg13: memref<1x16xf32, #tpu.memory_space<vmem>>, %arg14: memref<16x4xbf16, #tpu.memory_space<vmem>>, %arg15: memref<1x4xf32, #tpu.memory_space<vmem>>, %arg16: memref<16x128xf32, #tpu.memory_space<vmem>>) attributes {dimension_semantics = [], scalar_prefetch = 0 : i64, scratch_operands = 0 : i64, tpu.core_type = #tpu.core_type<tc>} {
    %c0 = arith.constant 0 : index
    %c0_0 = arith.constant 0 : index
    %c0_1 = arith.constant 0 : index
    %0 = vector.load %arg0[%c0, %c0_0, %c0_1] : memref<2x8x32xf32, #tpu.memory_space<vmem>>, vector<1x8x32xf32>
    %1 = vector.shape_cast %0 : vector<1x8x32xf32> to vector<8x32xf32>
    %cst = arith.constant dense<0.000000e+00> : vector<32xf32>
    %2 = vector.multi_reduction <add>, %1, %cst [0] : vector<8x32xf32> to vector<32xf32>
    %3 = vector.shape_cast %2 : vector<32xf32> to vector<1x32xf32>
    %cst_2 = arith.constant 8.000000e+00 : f32
    %4 = vector.broadcast %cst_2 : f32 to vector<1x32xf32>
    %5 = arith.divf %3, %4 : vector<1x32xf32>
    %6 = vector.broadcast %5 : vector<1x32xf32> to vector<8x32xf32>
    %7 = arith.subf %1, %6 : vector<8x32xf32>
    %8 = arith.mulf %7, %7 : vector<8x32xf32>
    %cst_3 = arith.constant dense<0.000000e+00> : vector<32xf32>
    %9 = vector.multi_reduction <add>, %8, %cst_3 [0] : vector<8x32xf32> to vector<32xf32>
    %10 = vector.shape_cast %9 : vector<32xf32> to vector<1x32xf32>
    %cst_4 = arith.constant 8.000000e+00 : f32
    %11 = vector.broadcast %cst_4 : f32 to vector<1x32xf32>
    %12 = arith.divf %10, %11 : vector<1x32xf32>
    %cst_5 = arith.constant 9.99999974E-6 : f32
    %13 = vector.broadcast %cst_5 : f32 to vector<1x32xf32>
    %14 = arith.addf %12, %13 : vector<1x32xf32>
    %15 = math.rsqrt %14 : vector<1x32xf32>
    %16 = vector.broadcast %15 : vector<1x32xf32> to vector<8x32xf32>
    %17 = arith.mulf %7, %16 : vector<8x32xf32>
    %c0_6 = arith.constant 0 : index
    %c0_7 = arith.constant 0 : index
    %c0_8 = arith.constant 0 : index
    %18 = vector.load %arg2[%c0_6, %c0_7, %c0_8] : memref<2x32x32xbf16, #tpu.memory_space<vmem>>, vector<1x32x32xbf16>
    %19 = vector.shape_cast %18 : vector<1x32x32xbf16> to vector<32x32xbf16>
    %c0_9 = arith.constant 0 : index
    %c0_10 = arith.constant 0 : index
    %c0_11 = arith.constant 0 : index
    %20 = vector.load %arg3[%c0_9, %c0_10, %c0_11] : memref<2x1x32xf32, #tpu.memory_space<vmem>>, vector<1x1x32xf32>
    %21 = vector.shape_cast %20 : vector<1x1x32xf32> to vector<1x32xf32>
    %22 = arith.truncf %17 : vector<8x32xf32> to vector<8x32xbf16>
    %cst_12 = arith.constant dense<0.000000e+00> : vector<8x32xf32>
    %23 = tpu.matmul %22, %19, %cst_12 {dimension_numbers = #tpu.dot_dimension_numbers<[1], [0], [0], [1], [0, 0, 1, 1], [], []>} : vector<8x32xbf16>, vector<32x32xbf16>, vector<8x32xf32> -> vector<8x32xf32>
    %24 = vector.broadcast %21 : vector<1x32xf32> to vector<8x32xf32>
    %25 = arith.addf %23, %24 : vector<8x32xf32>
    %cst_13 = arith.constant 0.000000e+00 : f32
    %26 = vector.broadcast %cst_13 : f32 to vector<8x32xf32>
    %27 = arith.maximumf %25, %26 : vector<8x32xf32>
    %c0_14 = arith.constant 0 : index
    %c0_15 = arith.constant 0 : index
    %c0_16 = arith.constant 0 : index
    %28 = vector.load %arg4[%c0_14, %c0_15, %c0_16] : memref<2x32x32xbf16, #tpu.memory_space<vmem>>, vector<1x32x32xbf16>
    %29 = vector.shape_cast %28 : vector<1x32x32xbf16> to vector<32x32xbf16>
    %c0_17 = arith.constant 0 : index
    %c0_18 = arith.constant 0 : index
    %c0_19 = arith.constant 0 : index
    %30 = vector.load %arg5[%c0_17, %c0_18, %c0_19] : memref<2x1x32xf32, #tpu.memory_space<vmem>>, vector<1x1x32xf32>
    %31 = vector.shape_cast %30 : vector<1x1x32xf32> to vector<1x32xf32>
    %32 = arith.truncf %27 : vector<8x32xf32> to vector<8x32xbf16>
    %cst_20 = arith.constant dense<0.000000e+00> : vector<8x32xf32>
    %33 = tpu.matmul %32, %29, %cst_20 {dimension_numbers = #tpu.dot_dimension_numbers<[1], [0], [0], [1], [0, 0, 1, 1], [], []>} : vector<8x32xbf16>, vector<32x32xbf16>, vector<8x32xf32> -> vector<8x32xf32>
    %34 = vector.broadcast %31 : vector<1x32xf32> to vector<8x32xf32>
    %35 = arith.addf %33, %34 : vector<8x32xf32>
    %cst_21 = arith.constant 0.000000e+00 : f32
    %36 = vector.broadcast %cst_21 : f32 to vector<8x32xf32>
    %37 = arith.maximumf %35, %36 : vector<8x32xf32>
    %c0_22 = arith.constant 0 : index
    %c0_23 = arith.constant 0 : index
    %c0_24 = arith.constant 0 : index
    %38 = vector.load %arg6[%c0_22, %c0_23, %c0_24] : memref<2x32x32xbf16, #tpu.memory_space<vmem>>, vector<1x32x32xbf16>
    %39 = vector.shape_cast %38 : vector<1x32x32xbf16> to vector<32x32xbf16>
    %c0_25 = arith.constant 0 : index
    %c0_26 = arith.constant 0 : index
    %c0_27 = arith.constant 0 : index
    %40 = vector.load %arg7[%c0_25, %c0_26, %c0_27] : memref<2x1x32xf32, #tpu.memory_space<vmem>>, vector<1x1x32xf32>
    %41 = vector.shape_cast %40 : vector<1x1x32xf32> to vector<1x32xf32>
    %42 = arith.truncf %37 : vector<8x32xf32> to vector<8x32xbf16>
    %cst_28 = arith.constant dense<0.000000e+00> : vector<8x32xf32>
    %43 = tpu.matmul %42, %39, %cst_28 {dimension_numbers = #tpu.dot_dimension_numbers<[1], [0], [0], [1], [0, 0, 1, 1], [], []>} : vector<8x32xbf16>, vector<32x32xbf16>, vector<8x32xf32> -> vector<8x32xf32>
    %44 = vector.broadcast %41 : vector<1x32xf32> to vector<8x32xf32>
    %45 = arith.addf %43, %44 : vector<8x32xf32>
    %cst_29 = arith.constant 0.000000e+00 : f32
    %46 = vector.broadcast %cst_29 : f32 to vector<8x32xf32>
    %47 = arith.maximumf %45, %46 : vector<8x32xf32>
    %c0_30 = arith.constant 0 : index
    %c0_31 = arith.constant 0 : index
    %c0_32 = arith.constant 0 : index
    %48 = vector.load %arg8[%c0_30, %c0_31, %c0_32] : memref<2x32x32xbf16, #tpu.memory_space<vmem>>, vector<1x32x32xbf16>
    %49 = vector.shape_cast %48 : vector<1x32x32xbf16> to vector<32x32xbf16>
    %c0_33 = arith.constant 0 : index
    %c0_34 = arith.constant 0 : index
    %c0_35 = arith.constant 0 : index
    %50 = vector.load %arg9[%c0_33, %c0_34, %c0_35] : memref<2x1x32xf32, #tpu.memory_space<vmem>>, vector<1x1x32xf32>
    %51 = vector.shape_cast %50 : vector<1x1x32xf32> to vector<1x32xf32>
    %52 = arith.truncf %47 : vector<8x32xf32> to vector<8x32xbf16>
    %cst_36 = arith.constant dense<0.000000e+00> : vector<8x32xf32>
    %53 = tpu.matmul %52, %49, %cst_36 {dimension_numbers = #tpu.dot_dimension_numbers<[1], [0], [0], [1], [0, 0, 1, 1], [], []>} : vector<8x32xbf16>, vector<32x32xbf16>, vector<8x32xf32> -> vector<8x32xf32>
    %54 = vector.broadcast %51 : vector<1x32xf32> to vector<8x32xf32>
    %55 = arith.addf %53, %54 : vector<8x32xf32>
    %56 = vector.extract_strided_slice %55 {offsets = [0, 0], sizes = [8, 16], strides = [1, 1]} : vector<8x32xf32> to vector<8x16xf32>
    %57 = vector.extract_strided_slice %55 {offsets = [0, 16], sizes = [8, 16], strides = [1, 1]} : vector<8x32xf32> to vector<8x16xf32>
    %cst_37 = arith.constant 5.000000e-01 : f32
    %58 = vector.broadcast %cst_37 : f32 to vector<8x16xf32>
    %59 = arith.mulf %58, %57 : vector<8x16xf32>
    %60 = math.exp %59 : vector<8x16xf32>
    %c0_38 = arith.constant 0 : index
    %c0_39 = arith.constant 0 : index
    %c0_40 = arith.constant 0 : index
    %61 = vector.load %arg1[%c0_38, %c0_39, %c0_40] : memref<2x8x16xf32, #tpu.memory_space<vmem>>, vector<1x8x16xf32>
    %62 = vector.shape_cast %61 : vector<1x8x16xf32> to vector<8x16xf32>
    %63 = arith.mulf %60, %62 : vector<8x16xf32>
    %64 = arith.addf %56, %63 : vector<8x16xf32>
    %c1 = arith.constant 1 : index
    %c0_41 = arith.constant 0 : index
    %c0_42 = arith.constant 0 : index
    %65 = vector.load %arg0[%c1, %c0_41, %c0_42] : memref<2x8x32xf32, #tpu.memory_space<vmem>>, vector<1x8x32xf32>
    %66 = vector.shape_cast %65 : vector<1x8x32xf32> to vector<8x32xf32>
    %cst_43 = arith.constant dense<0.000000e+00> : vector<32xf32>
    %67 = vector.multi_reduction <add>, %66, %cst_43 [0] : vector<8x32xf32> to vector<32xf32>
    %68 = vector.shape_cast %67 : vector<32xf32> to vector<1x32xf32>
    %cst_44 = arith.constant 8.000000e+00 : f32
    %69 = vector.broadcast %cst_44 : f32 to vector<1x32xf32>
    %70 = arith.divf %68, %69 : vector<1x32xf32>
    %71 = vector.broadcast %70 : vector<1x32xf32> to vector<8x32xf32>
    %72 = arith.subf %66, %71 : vector<8x32xf32>
    %73 = arith.mulf %72, %72 : vector<8x32xf32>
    %cst_45 = arith.constant dense<0.000000e+00> : vector<32xf32>
    %74 = vector.multi_reduction <add>, %73, %cst_45 [0] : vector<8x32xf32> to vector<32xf32>
    %75 = vector.shape_cast %74 : vector<32xf32> to vector<1x32xf32>
    %cst_46 = arith.constant 8.000000e+00 : f32
    %76 = vector.broadcast %cst_46 : f32 to vector<1x32xf32>
    %77 = arith.divf %75, %76 : vector<1x32xf32>
    %cst_47 = arith.constant 9.99999974E-6 : f32
    %78 = vector.broadcast %cst_47 : f32 to vector<1x32xf32>
    %79 = arith.addf %77, %78 : vector<1x32xf32>
    %80 = math.rsqrt %79 : vector<1x32xf32>
    %81 = vector.broadcast %80 : vector<1x32xf32> to vector<8x32xf32>
    %82 = arith.mulf %72, %81 : vector<8x32xf32>
    %c1_48 = arith.constant 1 : index
    %c0_49 = arith.constant 0 : index
    %c0_50 = arith.constant 0 : index
    %83 = vector.load %arg2[%c1_48, %c0_49, %c0_50] : memref<2x32x32xbf16, #tpu.memory_space<vmem>>, vector<1x32x32xbf16>
    %84 = vector.shape_cast %83 : vector<1x32x32xbf16> to vector<32x32xbf16>
    %c1_51 = arith.constant 1 : index
    %c0_52 = arith.constant 0 : index
    %c0_53 = arith.constant 0 : index
    %85 = vector.load %arg3[%c1_51, %c0_52, %c0_53] : memref<2x1x32xf32, #tpu.memory_space<vmem>>, vector<1x1x32xf32>
    %86 = vector.shape_cast %85 : vector<1x1x32xf32> to vector<1x32xf32>
    %87 = arith.truncf %82 : vector<8x32xf32> to vector<8x32xbf16>
    %cst_54 = arith.constant dense<0.000000e+00> : vector<8x32xf32>
    %88 = tpu.matmul %87, %84, %cst_54 {dimension_numbers = #tpu.dot_dimension_numbers<[1], [0], [0], [1], [0, 0, 1, 1], [], []>} : vector<8x32xbf16>, vector<32x32xbf16>, vector<8x32xf32> -> vector<8x32xf32>
    %89 = vector.broadcast %86 : vector<1x32xf32> to vector<8x32xf32>
    %90 = arith.addf %88, %89 : vector<8x32xf32>
    %cst_55 = arith.constant 0.000000e+00 : f32
    %91 = vector.broadcast %cst_55 : f32 to vector<8x32xf32>
    %92 = arith.maximumf %90, %91 : vector<8x32xf32>
    %c1_56 = arith.constant 1 : index
    %c0_57 = arith.constant 0 : index
    %c0_58 = arith.constant 0 : index
    %93 = vector.load %arg4[%c1_56, %c0_57, %c0_58] : memref<2x32x32xbf16, #tpu.memory_space<vmem>>, vector<1x32x32xbf16>
    %94 = vector.shape_cast %93 : vector<1x32x32xbf16> to vector<32x32xbf16>
    %c1_59 = arith.constant 1 : index
    %c0_60 = arith.constant 0 : index
    %c0_61 = arith.constant 0 : index
    %95 = vector.load %arg5[%c1_59, %c0_60, %c0_61] : memref<2x1x32xf32, #tpu.memory_space<vmem>>, vector<1x1x32xf32>
    %96 = vector.shape_cast %95 : vector<1x1x32xf32> to vector<1x32xf32>
    %97 = arith.truncf %92 : vector<8x32xf32> to vector<8x32xbf16>
    %cst_62 = arith.constant dense<0.000000e+00> : vector<8x32xf32>
    %98 = tpu.matmul %97, %94, %cst_62 {dimension_numbers = #tpu.dot_dimension_numbers<[1], [0], [0], [1], [0, 0, 1, 1], [], []>} : vector<8x32xbf16>, vector<32x32xbf16>, vector<8x32xf32> -> vector<8x32xf32>
    %99 = vector.broadcast %96 : vector<1x32xf32> to vector<8x32xf32>
    %100 = arith.addf %98, %99 : vector<8x32xf32>
    %cst_63 = arith.constant 0.000000e+00 : f32
    %101 = vector.broadcast %cst_63 : f32 to vector<8x32xf32>
    %102 = arith.maximumf %100, %101 : vector<8x32xf32>
    %c1_64 = arith.constant 1 : index
    %c0_65 = arith.constant 0 : index
    %c0_66 = arith.constant 0 : index
    %103 = vector.load %arg6[%c1_64, %c0_65, %c0_66] : memref<2x32x32xbf16, #tpu.memory_space<vmem>>, vector<1x32x32xbf16>
    %104 = vector.shape_cast %103 : vector<1x32x32xbf16> to vector<32x32xbf16>
    %c1_67 = arith.constant 1 : index
    %c0_68 = arith.constant 0 : index
    %c0_69 = arith.constant 0 : index
    %105 = vector.load %arg7[%c1_67, %c0_68, %c0_69] : memref<2x1x32xf32, #tpu.memory_space<vmem>>, vector<1x1x32xf32>
    %106 = vector.shape_cast %105 : vector<1x1x32xf32> to vector<1x32xf32>
    %107 = arith.truncf %102 : vector<8x32xf32> to vector<8x32xbf16>
    %cst_70 = arith.constant dense<0.000000e+00> : vector<8x32xf32>
    %108 = tpu.matmul %107, %104, %cst_70 {dimension_numbers = #tpu.dot_dimension_numbers<[1], [0], [0], [1], [0, 0, 1, 1], [], []>} : vector<8x32xbf16>, vector<32x32xbf16>, vector<8x32xf32> -> vector<8x32xf32>
    %109 = vector.broadcast %106 : vector<1x32xf32> to vector<8x32xf32>
    %110 = arith.addf %108, %109 : vector<8x32xf32>
    %cst_71 = arith.constant 0.000000e+00 : f32
    %111 = vector.broadcast %cst_71 : f32 to vector<8x32xf32>
    %112 = arith.maximumf %110, %111 : vector<8x32xf32>
    %c1_72 = arith.constant 1 : index
    %c0_73 = arith.constant 0 : index
    %c0_74 = arith.constant 0 : index
    %113 = vector.load %arg8[%c1_72, %c0_73, %c0_74] : memref<2x32x32xbf16, #tpu.memory_space<vmem>>, vector<1x32x32xbf16>
    %114 = vector.shape_cast %113 : vector<1x32x32xbf16> to vector<32x32xbf16>
    %c1_75 = arith.constant 1 : index
    %c0_76 = arith.constant 0 : index
    %c0_77 = arith.constant 0 : index
    %115 = vector.load %arg9[%c1_75, %c0_76, %c0_77] : memref<2x1x32xf32, #tpu.memory_space<vmem>>, vector<1x1x32xf32>
    %116 = vector.shape_cast %115 : vector<1x1x32xf32> to vector<1x32xf32>
    %117 = arith.truncf %112 : vector<8x32xf32> to vector<8x32xbf16>
    %cst_78 = arith.constant dense<0.000000e+00> : vector<8x32xf32>
    %118 = tpu.matmul %117, %114, %cst_78 {dimension_numbers = #tpu.dot_dimension_numbers<[1], [0], [0], [1], [0, 0, 1, 1], [], []>} : vector<8x32xbf16>, vector<32x32xbf16>, vector<8x32xf32> -> vector<8x32xf32>
    %119 = vector.broadcast %116 : vector<1x32xf32> to vector<8x32xf32>
    %120 = arith.addf %118, %119 : vector<8x32xf32>
    %121 = vector.extract_strided_slice %120 {offsets = [0, 0], sizes = [8, 16], strides = [1, 1]} : vector<8x32xf32> to vector<8x16xf32>
    %122 = vector.extract_strided_slice %120 {offsets = [0, 16], sizes = [8, 16], strides = [1, 1]} : vector<8x32xf32> to vector<8x16xf32>
    %cst_79 = arith.constant 5.000000e-01 : f32
    %123 = vector.broadcast %cst_79 : f32 to vector<8x16xf32>
    %124 = arith.mulf %123, %122 : vector<8x16xf32>
    %125 = math.exp %124 : vector<8x16xf32>
    %c1_80 = arith.constant 1 : index
    %c0_81 = arith.constant 0 : index
    %c0_82 = arith.constant 0 : index
    %126 = vector.load %arg1[%c1_80, %c0_81, %c0_82] : memref<2x8x16xf32, #tpu.memory_space<vmem>>, vector<1x8x16xf32>
    %127 = vector.shape_cast %126 : vector<1x8x16xf32> to vector<8x16xf32>
    %128 = arith.mulf %125, %127 : vector<8x16xf32>
    %129 = arith.addf %121, %128 : vector<8x16xf32>
    %130 = tpu.concatenate %56, %121 in 0 : vector<8x16xf32>, vector<8x16xf32> -> vector<16x16xf32>
    %131 = tpu.concatenate %60, %125 in 0 : vector<8x16xf32>, vector<8x16xf32> -> vector<16x16xf32>
    %132 = tpu.concatenate %64, %129 in 0 : vector<8x16xf32>, vector<8x16xf32> -> vector<16x16xf32>
    %c0_83 = arith.constant 0 : index
    %c0_84 = arith.constant 0 : index
    %133 = vector.load %arg10[%c0_83, %c0_84] : memref<16x16xbf16, #tpu.memory_space<vmem>>, vector<16x16xbf16>
    %c0_85 = arith.constant 0 : index
    %c0_86 = arith.constant 0 : index
    %134 = vector.load %arg11[%c0_85, %c0_86] : memref<1x16xf32, #tpu.memory_space<vmem>>, vector<1x16xf32>
    %135 = arith.truncf %132 : vector<16x16xf32> to vector<16x16xbf16>
    %cst_87 = arith.constant dense<0.000000e+00> : vector<16x16xf32>
    %136 = tpu.matmul %135, %133, %cst_87 {dimension_numbers = #tpu.dot_dimension_numbers<[1], [0], [0], [1], [0, 0, 1, 1], [], []>} : vector<16x16xbf16>, vector<16x16xbf16>, vector<16x16xf32> -> vector<16x16xf32>
    %137 = vector.broadcast %134 : vector<1x16xf32> to vector<16x16xf32>
    %138 = arith.addf %136, %137 : vector<16x16xf32>
    %cst_88 = arith.constant 0.000000e+00 : f32
    %139 = vector.broadcast %cst_88 : f32 to vector<16x16xf32>
    %140 = arith.maximumf %138, %139 : vector<16x16xf32>
    %c0_89 = arith.constant 0 : index
    %c0_90 = arith.constant 0 : index
    %141 = vector.load %arg12[%c0_89, %c0_90] : memref<16x16xbf16, #tpu.memory_space<vmem>>, vector<16x16xbf16>
    %c0_91 = arith.constant 0 : index
    %c0_92 = arith.constant 0 : index
    %142 = vector.load %arg13[%c0_91, %c0_92] : memref<1x16xf32, #tpu.memory_space<vmem>>, vector<1x16xf32>
    %143 = arith.truncf %140 : vector<16x16xf32> to vector<16x16xbf16>
    %cst_93 = arith.constant dense<0.000000e+00> : vector<16x16xf32>
    %144 = tpu.matmul %143, %141, %cst_93 {dimension_numbers = #tpu.dot_dimension_numbers<[1], [0], [0], [1], [0, 0, 1, 1], [], []>} : vector<16x16xbf16>, vector<16x16xbf16>, vector<16x16xf32> -> vector<16x16xf32>
    %145 = vector.broadcast %142 : vector<1x16xf32> to vector<16x16xf32>
    %146 = arith.addf %144, %145 : vector<16x16xf32>
    %cst_94 = arith.constant 0.000000e+00 : f32
    %147 = vector.broadcast %cst_94 : f32 to vector<16x16xf32>
    %148 = arith.maximumf %146, %147 : vector<16x16xf32>
    %c0_95 = arith.constant 0 : index
    %c0_96 = arith.constant 0 : index
    %149 = vector.load %arg14[%c0_95, %c0_96] : memref<16x4xbf16, #tpu.memory_space<vmem>>, vector<16x4xbf16>
    %c0_97 = arith.constant 0 : index
    %c0_98 = arith.constant 0 : index
    %150 = vector.load %arg15[%c0_97, %c0_98] : memref<1x4xf32, #tpu.memory_space<vmem>>, vector<1x4xf32>
    %151 = arith.truncf %148 : vector<16x16xf32> to vector<16x16xbf16>
    %cst_99 = arith.constant dense<0.000000e+00> : vector<16x4xf32>
    %152 = tpu.matmul %151, %149, %cst_99 {dimension_numbers = #tpu.dot_dimension_numbers<[1], [0], [0], [1], [0, 0, 1, 1], [], []>} : vector<16x16xbf16>, vector<16x4xbf16>, vector<16x4xf32> -> vector<16x4xf32>
    %153 = vector.broadcast %150 : vector<1x4xf32> to vector<16x4xf32>
    %154 = arith.addf %152, %153 : vector<16x4xf32>
    %155 = arith.negf %154 : vector<16x4xf32>
    %156 = math.exp %155 : vector<16x4xf32>
    %cst_100 = arith.constant 1.000000e+00 : f32
    %157 = vector.broadcast %cst_100 : f32 to vector<16x4xf32>
    %158 = arith.addf %157, %156 : vector<16x4xf32>
    %159 = arith.divf %157, %158 : vector<16x4xf32>
    %cst_101 = arith.constant 0.000000e+00 : f32
    %160 = vector.broadcast %cst_101 : f32 to vector<16x76xf32>
    %161 = tpu.concatenate %130, %131, %132, %159, %160 in 1 : vector<16x16xf32>, vector<16x16xf32>, vector<16x16xf32>, vector<16x4xf32>, vector<16x76xf32> -> vector<16x128xf32>
    %c0_102 = arith.constant 0 : index
    %c0_103 = arith.constant 0 : index
    %162 = vector.load %arg16[%c0_102, %c0_103] : memref<16x128xf32, #tpu.memory_space<vmem>>, vector<16x128xf32>
    tpu.vector_store %arg16[%c0_102, %c0_103], %161 {strides = array<i32>} : memref<16x128xf32, #tpu.memory_space<vmem>>, vector<16x128xf32>,
    return
  }
}

</mosaic_0001>

<llo_original>
// kernel: _mcvc2_fused.1
$region0: #{_mcvc2_fused.1}
  #allocation0 [shape = 'u32[]', space=smem, size = 0x4, offset = 0x4, fixed_abs, tag = 'smem constant byte address 0x4 - core index']
  #allocation1 [shape = 'u32[144,128]{1,0:T(1,128)}', space=vmem, size = 0x12000, scoped, tag = 'internal scratch']
  %s0 = inlined_call_operand.hbm [shape: f32[2,8,32], index: 0, kind: input, shape index: {}]
  %s1 = inlined_call_operand.vmem [shape: f32[2,8,16], index: 1, kind: input, shape index: {}]
  %s2 = inlined_call_operand.vmem [shape: bf16[2,32,32], index: 2, kind: input, shape index: {}]
  %s3 = inlined_call_operand.hbm [shape: f32[2,1,32], index: 3, kind: input, shape index: {}]
  %s4 = inlined_call_operand.vmem [shape: bf16[2,32,32], index: 4, kind: input, shape index: {}]
  %s5 = inlined_call_operand.hbm [shape: f32[2,1,32], index: 5, kind: input, shape index: {}]
  %s6 = inlined_call_operand.hbm [shape: bf16[2,32,32], index: 6, kind: input, shape index: {}]
  %s7 = inlined_call_operand.hbm [shape: f32[2,1,32], index: 7, kind: input, shape index: {}]
  %s8 = inlined_call_operand.hbm [shape: bf16[2,32,32], index: 8, kind: input, shape index: {}]
  %s9 = inlined_call_operand.hbm [shape: f32[2,1,32], index: 9, kind: input, shape index: {}]
  %s10 = inlined_call_operand.vmem [shape: bf16[16,16], index: 10, kind: input, shape index: {}]
  %s11 = inlined_call_operand.vmem [shape: f32[1,16], index: 11, kind: input, shape index: {}]
  %s12 = inlined_call_operand.vmem [shape: bf16[16,16], index: 12, kind: input, shape index: {}]
  %s13 = inlined_call_operand.vmem [shape: f32[1,16], index: 13, kind: input, shape index: {}]
  %s14 = inlined_call_operand.vmem [shape: bf16[16,4], index: 14, kind: input, shape index: {}]
  %s15 = inlined_call_operand.vmem [shape: f32[1,4], index: 15, kind: input, shape index: {}]
  %s16 = inlined_call_operand.vmem [shape: f32[16,128], index: 16, kind: output, shape index: {}]
  %s17 = sld [smem:[#allocation0]]
  $region102: #{_mcvc2_fused.1} parent=0
    _
  %s19 = ssub.s32 1, %s17
  %s20 = scalar_select 0, %s19, %s17
  $region1: #{_mcvc2_fused.1} parent=0
    #allocation2 [shape = 'u8[8192]{0}', space=vmem, size = 0x2000, scoped, tag = 'input window, operand 0, single buffered']
    #allocation3 [shape = 's32[1]{0}', space=sflag, size = 0x4, scoped, tag = 'scoped memory for _mcvc2_fused.1']
    #allocation4 [shape = 'u8[1024]{0}', space=vmem, size = 0x400, scoped, tag = 'input window, operand 3, single buffered']
    #allocation5 [shape = 's32[1]{0}', space=sflag, size = 0x4, scoped, tag = 'scoped memory for _mcvc2_fused.1']
    #allocation6 [shape = 'u8[1024]{0}', space=vmem, size = 0x400, scoped, tag = 'input window, operand 5, single buffered']
    #allocation7 [shape = 'u8[16384]{0}', space=vmem, size = 0x4000, scoped, tag = 'input window, operand 6, single buffered']
    #allocation8 [shape = 's32[1]{0}', space=sflag, size = 0x4, scoped, tag = 'scoped memory for _mcvc2_fused.1']
    #allocation9 [shape = 'u8[1024]{0}', space=vmem, size = 0x400, scoped, tag = 'input window, operand 7, single buffered']
    #allocation10 [shape = 'u8[16384]{0}', space=vmem, size = 0x4000, scoped, tag = 'input window, operand 8, single buffered']
    #allocation11 [shape = 's32[1]{0}', space=sflag, size = 0x4, scoped, tag = 'scoped memory for _mcvc2_fused.1']
    #allocation12 [shape = 'u8[1024]{0}', space=vmem, size = 0x400, scoped, tag = 'input window, operand 9, single buffered']
    %21 = vsyncpa [#allocation3], 0
    %22 = vsyncpa [#allocation5], 0
    %23 = vsyncpa [#allocation8], 0
    %24 = vsyncpa [#allocation11], 0
    // Predicated region
    $region2: #{_mcvc2_fused.1} parent=1 // pred_check
      _
    $region3: #{_mcvc2_fused.1} parent=1 // pred_check_branch
      %26 = sbr.rel (0) target = $region5
    $region4: #{_mcvc2_fused.1} parent=1 // pred_region
      %s28 = ssub.s32 256, 256
      %29 = vsyncadd [#allocation3], %s28
      %s30 = sshll.u32 [#allocation2], 4
      %s31 = int_to_ptr.vmem [resolvable:$true] %s30
      %36 = dma.hbm_to_vmem [thread:$0]  %s0, 256, %s31, [#allocation3], 128, 128, 8
    $region5: #{_mcvc2_fused.1} parent=1 // pred_fallthru
      _
    // Predicated region
    $region6: #{_mcvc2_fused.1} parent=1 // pred_check
      _
    $region7: #{_mcvc2_fused.1} parent=1 // pred_check_branch
      %38 = sbr.rel (0) target = $region9
    $region8: #{_mcvc2_fused.1} parent=1 // pred_region
      _
    $region9: #{_mcvc2_fused.1} parent=1 // pred_fallthru
      _
    // Predicated region
    $region10: #{_mcvc2_fused.1} parent=1 // pred_check
      _
    $region11: #{_mcvc2_fused.1} parent=1 // pred_check_branch
      %40 = sbr.rel (0) target = $region13
    $region12: #{_mcvc2_fused.1} parent=1 // pred_region
      _
    $region13: #{_mcvc2_fused.1} parent=1 // pred_fallthru
      _
    // Predicated region
    $region14: #{_mcvc2_fused.1} parent=1 // pred_check
      _
    $region15: #{_mcvc2_fused.1} parent=1 // pred_check_branch
      %42 = sbr.rel (0) target = $region17
    $region16: #{_mcvc2_fused.1} parent=1 // pred_region
      %s44 = ssub.s32 32, 32
      %45 = vsyncadd [#allocation5], %s44
      %s46 = sshll.u32 [#allocation4], 4
      %s47 = int_to_ptr.vmem [resolvable:$true] %s46
      %52 = dma.hbm_to_vmem [thread:$0]  %s3, 32, %s47, [#allocation5], 16, 16, 1
    $region17: #{_mcvc2_fused.1} parent=1 // pred_fallthru
      _
    // Predicated region
    $region18: #{_mcvc2_fused.1} parent=1 // pred_check
      _
    $region19: #{_mcvc2_fused.1} parent=1 // pred_check_branch
      %54 = sbr.rel (0) target = $region21
    $region20: #{_mcvc2_fused.1} parent=1 // pred_region
      _
    $region21: #{_mcvc2_fused.1} parent=1 // pred_fallthru
      _
    // Predicated region
    $region22: #{_mcvc2_fused.1} parent=1 // pred_check
      _
    $region23: #{_mcvc2_fused.1} parent=1 // pred_check_branch
      %56 = sbr.rel (0) target = $region25
    $region24: #{_mcvc2_fused.1} parent=1 // pred_region
      %s58 = ssub.s32 32, 32
      %59 = vsyncadd [#allocation5], %s58
      %s60 = sshll.u32 [#allocation6], 4
      %s61 = int_to_ptr.vmem [resolvable:$true] %s60
      %66 = dma.hbm_to_vmem [thread:$0]  %s5, 32, %s61, [#allocation5], 16, 16, 1
    $region25: #{_mcvc2_fused.1} parent=1 // pred_fallthru
      _
    // Predicated region
    $region26: #{_mcvc2_fused.1} parent=1 // pred_check
      _
    $region27: #{_mcvc2_fused.1} parent=1 // pred_check_branch
      %68 = sbr.rel (0) target = $region29
    $region28: #{_mcvc2_fused.1} parent=1 // pred_region
      %s70 = ssub.s32 512, 512
      %71 = vsyncadd [#allocation8], %s70
      %s72 = sshll.u32 [#allocation7], 4
      %s73 = int_to_ptr.vmem [resolvable:$true] %s72
      %78 = dma.hbm_to_vmem [thread:$0]  %s6, 512, %s73, [#allocation8], 64, 64, 4
    $region29: #{_mcvc2_fused.1} parent=1 // pred_fallthru
      _
    // Predicated region
    $region30: #{_mcvc2_fused.1} parent=1 // pred_check
      _
    $region31: #{_mcvc2_fused.1} parent=1 // pred_check_branch
      %80 = sbr.rel (0) target = $region33
    $region32: #{_mcvc2_fused.1} parent=1 // pred_region
      %s82 = ssub.s32 32, 32
      %83 = vsyncadd [#allocation8], %s82
      %s84 = sshll.u32 [#allocation9], 4
      %s85 = int_to_ptr.vmem [resolvable:$true] %s84
      %90 = dma.hbm_to_vmem [thread:$0]  %s7, 32, %s85, [#allocation8], 16, 16, 1
    $region33: #{_mcvc2_fused.1} parent=1 // pred_fallthru
      _
    // Predicated region
    $region34: #{_mcvc2_fused.1} parent=1 // pred_check
      _
    $region35: #{_mcvc2_fused.1} parent=1 // pred_check_branch
      %92 = sbr.rel (0) target = $region37
    $region36: #{_mcvc2_fused.1} parent=1 // pred_region
      %s94 = ssub.s32 512, 512
      %95 = vsyncadd [#allocation11], %s94
      %s96 = sshll.u32 [#allocation10], 4
      %s97 = int_to_ptr.vmem [resolvable:$true] %s96
      %102 = dma.hbm_to_vmem [thread:$0]  %s8, 512, %s97, [#allocation11], 64, 64, 4
    $region37: #{_mcvc2_fused.1} parent=1 // pred_fallthru
      _
    // Predicated region
    $region38: #{_mcvc2_fused.1} parent=1 // pred_check
      _
    $region39: #{_mcvc2_fused.1} parent=1 // pred_check_branch
      %104 = sbr.rel (0) target = $region41
    $region40: #{_mcvc2_fused.1} parent=1 // pred_region
      %s106 = ssub.s32 32, 32
      %107 = vsyncadd [#allocation11], %s106
      %s108 = sshll.u32 [#allocation12], 4
      %s109 = int_to_ptr.vmem [resolvable:$true] %s108
      %114 = dma.hbm_to_vmem [thread:$0]  %s9, 32, %s109, [#allocation11], 16, 16, 1
    $region41: #{_mcvc2_fused.1} parent=1 // pred_fallthru
      _
    // Predicated region
    $region42: #{_mcvc2_fused.1} parent=1 // pred_check
      _
    $region43: #{_mcvc2_fused.1} parent=1 // pred_check_branch
      %116 = sbr.rel (0) target = $region45
    $region44: #{_mcvc2_fused.1} parent=1 // pred_region
      _
    $region45: #{_mcvc2_fused.1} parent=1 // pred_fallthru
      _
    // Predicated region
    $region46: #{_mcvc2_fused.1} parent=1 // pred_check
      _
    $region47: #{_mcvc2_fused.1} parent=1 // pred_check_branch
      %118 = sbr.rel (0) target = $region49
    $region48: #{_mcvc2_fused.1} parent=1 // pred_region
      _
    $region49: #{_mcvc2_fused.1} parent=1 // pred_fallthru
      _
    // Predicated region
    $region50: #{_mcvc2_fused.1} parent=1 // pred_check
      _
    $region51: #{_mcvc2_fused.1} parent=1 // pred_check_branch
      %120 = sbr.rel (0) target = $region53
    $region52: #{_mcvc2_fused.1} parent=1 // pred_region
      _
    $region53: #{_mcvc2_fused.1} parent=1 // pred_fallthru
      _
    // Predicated region
    $region54: #{_mcvc2_fused.1} parent=1 // pred_check
      _
    $region55: #{_mcvc2_fused.1} parent=1 // pred_check_branch
      %122 = sbr.rel (0) target = $region57
    $region56: #{_mcvc2_fused.1} parent=1 // pred_region
      _
    $region57: #{_mcvc2_fused.1} parent=1 // pred_fallthru
      _
    // Predicated region
    $region58: #{_mcvc2_fused.1} parent=1 // pred_check
      _
    $region59: #{_mcvc2_fused.1} parent=1 // pred_check_branch
      %124 = sbr.rel (0) target = $region61
    $region60: #{_mcvc2_fused.1} parent=1 // pred_region
      _
    $region61: #{_mcvc2_fused.1} parent=1 // pred_fallthru
      _
    // Predicated region
    $region62: #{_mcvc2_fused.1} parent=1 // pred_check
      _
    $region63: #{_mcvc2_fused.1} parent=1 // pred_check_branch
      %126 = sbr.rel (0) target = $region65
    $region64: #{_mcvc2_fused.1} parent=1 // pred_region
      _
    $region65: #{_mcvc2_fused.1} parent=1 // pred_fallthru
      _
    // Predicated region
    $region66: #{_mcvc2_fused.1} parent=1 // pred_check
      _
    $region67: #{_mcvc2_fused.1} parent=1 // pred_check_branch
      %128 = sbr.rel (0) target = $region69
    $region68: #{_mcvc2_fused.1} parent=1 // pred_region
      %129 = dma.done [#allocation3], 256
    $region69: #{_mcvc2_fused.1} parent=1 // pred_fallthru
      _
    // Predicated region
    $region70: #{_mcvc2_fused.1} parent=1 // pred_check
      _
    $region71: #{_mcvc2_fused.1} parent=1 // pred_check_branch
      %131 = sbr.rel (0) target = $region73
    $region72: #{_mcvc2_fused.1} parent=1 // pred_region
      %132 = dma.done [#allocation5], 32
    $region73: #{_mcvc2_fused.1} parent=1 // pred_fallthru
      _
    // Predicated region
    $region74: #{_mcvc2_fused.1} parent=1 // pred_check
      _
    $region75: #{_mcvc2_fused.1} parent=1 // pred_check_branch
      %134 = sbr.rel (0) target = $region77
    $region76: #{_mcvc2_fused.1} parent=1 // pred_region
      %135 = dma.done [#allocation5], 32
    $region77: #{_mcvc2_fused.1} parent=1 // pred_fallthru
      _
    // Predicated region
    $region78: #{_mcvc2_fused.1} parent=1 // pred_check
      _
    $region79: #{_mcvc2_fused.1} parent=1 // pred_check_branch
      %137 = sbr.rel (0) target = $region81
    $region80: #{_mcvc2_fused.1} parent=1 // pred_region
      %138 = dma.done [#allocation8], 512
    $region81: #{_mcvc2_fused.1} parent=1 // pred_fallthru
      _
    // Predicated region
    $region82: #{_mcvc2_fused.1} parent=1 // pred_check
      _
    $region83: #{_mcvc2_fused.1} parent=1 // pred_check_branch
      %140 = sbr.rel (0) target = $region85
    $region84: #{_mcvc2_fused.1} parent=1 // pred_region
      %141 = dma.done [#allocation8], 32
    $region85: #{_mcvc2_fused.1} parent=1 // pred_fallthru
      _
    // Predicated region
    $region86: #{_mcvc2_fused.1} parent=1 // pred_check
      _
    $region87: #{_mcvc2_fused.1} parent=1 // pred_check_branch
      %143 = sbr.rel (0) target = $region89
    $region88: #{_mcvc2_fused.1} parent=1 // pred_region
      %144 = dma.done [#allocation11], 512
    $region89: #{_mcvc2_fused.1} parent=1 // pred_fallthru
      _
    // Predicated region
    $region90: #{_mcvc2_fused.1} parent=1 // pred_check
      _
    $region91: #{_mcvc2_fused.1} parent=1 // pred_check_branch
      %146 = sbr.rel (0) target = $region93
    $region92: #{_mcvc2_fused.1} parent=1 // pred_region
      %147 = dma.done [#allocation11], 32
    $region93: #{_mcvc2_fused.1} parent=1 // pred_fallthru
      _
    %v149 = vld [vmem:[#allocation2] sm:$0xff]
    %vm150 = vcmask 261120
    %v151 = vsel %vm150, %v149, 0.0
    %v152 = vrot.slane %v151, 4
    %v153 = vadd.f32 %v151, %v152
    %v154 = vrot.slane %v153, 2
    %v155 = vadd.f32 %v153, %v154
    %v156 = vrot.slane %v155, 1
    %v157 = vadd.f32 %v155, %v156
    %v158 = vrcp.pop 8.0
    %v159 = vmul.f32 %v157, %v158
    %v160 = vsub.f32 %v149, %v159
    %v161 = vmul.f32 %v160, %v160
    %v162 = vsel %vm150, %v161, 0.0
    %v163 = vrot.slane %v162, 4
    %v164 = vadd.f32 %v162, %v163
    %v165 = vrot.slane %v164, 2
    %v166 = vadd.f32 %v164, %v165
    %v167 = vrot.slane %v166, 1
    %v168 = vadd.f32 %v166, %v167
    %v169 = vmul.f32 %v168, %v158
    %v170 = vadd.f32 %v169, 1e-05
    %v171 = vrsqrt.pop %v170
    %v172 = vmul.f32 %v160, %v171
    %v173 = vld [vmem:[%s2] sm:$0xf]
    %v174 = vld [vmem:[%s2 + $0x4] sm:$0xf]
    %v175 = vld [vmem:[%s2 + $0x8] sm:$0xf]
    %v176 = vld [vmem:[%s2 + $0xc] sm:$0xf]
    %v177 = vld [vmem:[#allocation4] sm:$0x1]
    %v178 = vpack.c.bf16 %v172, %v172
    %v180 = vlaneseq
    %v181 = vshrl.u32 %v180, 7
    %v182 = vsub.s32 0, %v181
    %v183 = vrot.slane %v177, %v182
    %v189 = vunpack.c.l.b16 %v173
    %v190 = vunpack.c.l.b16 %v174
    %v191 = vunpack.c.l.b16 %v175
    %v192 = vunpack.c.l.b16 %v176
    %v193 = vpack.c.b16 %v190, %v189
    %v194 = vpack.c.b16 %v192, %v191
    %v198 = vsel %vm150, %v178, 0
    %200 = vmatprep.subr.bf16.mxu0 0
    %201 = vmatpush1.bf16.msra.mxu0 0
    %202 = vmatprep.subr.bf16.mxu0 0
    %203 = vmatpush1.bf16.msra.mxu0 0
    %204 = vmatprep.subr.bf16.mxu0 0
    %205 = vmatpush1.bf16.msra.mxu0 0
    %206 = vmatprep.subr.bf16.mxu0 0
    %207 = vmatpush1.bf16.msra.mxu0 0
    %208 = vmatprep.subr.bf16.mxu0 0
    %209 = vmatpush1.bf16.msra.mxu0 0
    %210 = vmatprep.subr.bf16.mxu0 0
    %211 = vmatpush1.bf16.msra.mxu0 0
    %212 = vmatprep.subr.bf16.mxu0 0
    %213 = vmatpush1.bf16.msra.mxu0 %v194
    %214 = vmatprep.subr.bf16.mxu0 0
    %215 = vmatpush1.bf16.msra.mxu0 %v193
    %216 = vmatprep.subr.bf16.mxu0 0
    %217 = vmatpush2.bf16.msra.mxu0 0
    %218 = vmatprep.subr.bf16.mxu0 0
    %219 = vmatpush2.bf16.msra.mxu0 0
    %220 = vmatprep.subr.bf16.mxu0 0
    %221 = vmatpush2.bf16.msra.mxu0 0
    %222 = vmatprep.subr.bf16.mxu0 0
    %223 = vmatpush2.bf16.msra.mxu0 0
    %224 = vmatprep.subr.bf16.mxu0 0
    %225 = vmatpush2.bf16.msra.mxu0 0
    %226 = vmatprep.subr.bf16.mxu0 0
    %227 = vmatpush2.bf16.msra.mxu0 0
    %228 = vmatprep.subr.bf16.mxu0 0
    %229 = vmatpush2.bf16.msra.mxu0 0
    %230 = vmatprep.subr.bf16.mxu0 0
    %231 = vmatpush2.bf16.msra.mxu0 0
    %232 = vmatprep.mubr.bf16.mxu0 0
    %233 = vmatmul.mubr.bf16.gmra.mxu0 %v198
    %v234 = vpop.f32.mrf.mxu0
    %v235 = vadd.f32 %v183, %v234
    %v236 = vpop.f32.mrf.mxu0
    %v237 = vpop.f32.mrf.mxu0
    %v238 = vpop.f32.mrf.mxu0
    %239 = vdwg.mxu0
    %v240 = vmax.f32 %v235, 0.0
    %v241 = vld [vmem:[%s4] sm:$0xf]
    %v242 = vld [vmem:[%s4 + $0x4] sm:$0xf]
    %v243 = vld [vmem:[%s4 + $0x8] sm:$0xf]
    %v244 = vld [vmem:[%s4 + $0xc] sm:$0xf]
    %v245 = vld [vmem:[#allocation6] sm:$0x1]
    %v246 = vpack.c.bf16 %v240, %v240
    %v248 = vlaneseq
    %v249 = vshrl.u32 %v248, 7
    %v250 = vsub.s32 0, %v249
    %v251 = vrot.slane %v245, %v250
    %v257 = vunpack.c.l.b16 %v241
    %v258 = vunpack.c.l.b16 %v242
    %v259 = vunpack.c.l.b16 %v243
    %v260 = vunpack.c.l.b16 %v244
    %v261 = vpack.c.b16 %v258, %v257
    %v262 = vpack.c.b16 %v260, %v259
    %v266 = vsel %vm150, %v246, 0
    %268 = vmatprep.subr.bf16.mxu0 0
    %269 = vmatpush1.bf16.msra.mxu0 0
    %270 = vmatprep.subr.bf16.mxu0 0
    %271 = vmatpush1.bf16.msra.mxu0 0
    %272 = vmatprep.subr.bf16.mxu0 0
    %273 = vmatpush1.bf16.msra.mxu0 0
    %274 = vmatprep.subr.bf16.mxu0 0
    %275 = vmatpush1.bf16.msra.mxu0 0
    %276 = vmatprep.subr.bf16.mxu0 0
    %277 = vmatpush1.bf16.msra.mxu0 0
    %278 = vmatprep.subr.bf16.mxu0 0
    %279 = vmatpush1.bf16.msra.mxu0 0
    %280 = vmatprep.subr.bf16.mxu0 0
    %281 = vmatpush1.bf16.msra.mxu0 %v262
    %282 = vmatprep.subr.bf16.mxu0 0
    %283 = vmatpush1.bf16.msra.mxu0 %v261
    %284 = vmatprep.subr.bf16.mxu0 0
    %285 = vmatpush2.bf16.msra.mxu0 0
    %286 = vmatprep.subr.bf16.mxu0 0
    %287 = vmatpush2.bf16.msra.mxu0 0
    %288 = vmatprep.subr.bf16.mxu0 0
    %289 = vmatpush2.bf16.msra.mxu0 0
    %290 = vmatprep.subr.bf16.mxu0 0
    %291 = vmatpush2.bf16.msra.mxu0 0
    %292 = vmatprep.subr.bf16.mxu0 0
    %293 = vmatpush2.bf16.msra.mxu0 0
    %294 = vmatprep.subr.bf16.mxu0 0
    %295 = vmatpush2.bf16.msra.mxu0 0
    %296 = vmatprep.subr.bf16.mxu0 0
    %297 = vmatpush2.bf16.msra.mxu0 0
    %298 = vmatprep.subr.bf16.mxu0 0
    %299 = vmatpush2.bf16.msra.mxu0 0
    %300 = vmatprep.mubr.bf16.mxu0 0
    %301 = vmatmul.mubr.bf16.gmra.mxu0 %v266
    %v302 = vpop.f32.mrf.mxu0
    %v303 = vadd.f32 %v251, %v302
    %v304 = vpop.f32.mrf.mxu0
    %v305 = vpop.f32.mrf.mxu0
    %v306 = vpop.f32.mrf.mxu0
    %307 = vdwg.mxu0
    %v308 = vmax.f32 %v303, 0.0
    %v309 = vld [vmem:[#allocation7] sm:$0xf]
    %v310 = vld [vmem:[#allocation7 + $0x4] sm:$0xf]
    %v311 = vld [vmem:[#allocation7 + $0x8] sm:$0xf]
    %v312 = vld [vmem:[#allocation7 + $0xc] sm:$0xf]
    %v313 = vld [vmem:[#allocation9] sm:$0x1]
    %v314 = vpack.c.bf16 %v308, %v308
    %v316 = vlaneseq
    %v317 = vshrl.u32 %v316, 7
    %v318 = vsub.s32 0, %v317
    %v319 = vrot.slane %v313, %v318
    %v325 = vunpack.c.l.b16 %v309
    %v326 = vunpack.c.l.b16 %v310
    %v327 = vunpack.c.l.b16 %v311
    %v328 = vunpack.c.l.b16 %v312
    %v329 = vpack.c.b16 %v326, %v325
    %v330 = vpack.c.b16 %v328, %v327
    %v334 = vsel %vm150, %v314, 0
    %336 = vmatprep.subr.bf16.mxu0 0
    %337 = vmatpush1.bf16.msra.mxu0 0
    %338 = vmatprep.subr.bf16.mxu0 0
    %339 = vmatpush1.bf16.msra.mxu0 0
    %340 = vmatprep.subr.bf16.mxu0 0
    %341 = vmatpush1.bf16.msra.mxu0 0
    %342 = vmatprep.subr.bf16.mxu0 0
    %343 = vmatpush1.bf16.msra.mxu0 0
    %344 = vmatprep.subr.bf16.mxu0 0
    %345 = vmatpush1.bf16.msra.mxu0 0
    %346 = vmatprep.subr.bf16.mxu0 0
    %347 = vmatpush1.bf16.msra.mxu0 0
    %348 = vmatprep.subr.bf16.mxu0 0
    %349 = vmatpush1.bf16.msra.mxu0 %v330
    %350 = vmatprep.subr.bf16.mxu0 0
    %351 = vmatpush1.bf16.msra.mxu0 %v329
    %352 = vmatprep.subr.bf16.mxu0 0
    %353 = vmatpush2.bf16.msra.mxu0 0
    %354 = vmatprep.subr.bf16.mxu0 0
    %355 = vmatpush2.bf16.msra.mxu0 0
    %356 = vmatprep.subr.bf16.mxu0 0
    %357 = vmatpush2.bf16.msra.mxu0 0
    %358 = vmatprep.subr.bf16.mxu0 0
    %359 = vmatpush2.bf16.msra.mxu0 0
    %360 = vmatprep.subr.bf16.mxu0 0
    %361 = vmatpush2.bf16.msra.mxu0 0
    %362 = vmatprep.subr.bf16.mxu0 0
    %363 = vmatpush2.bf16.msra.mxu0 0
    %364 = vmatprep.subr.bf16.mxu0 0
    %365 = vmatpush2.bf16.msra.mxu0 0
    %366 = vmatprep.subr.bf16.mxu0 0
    %367 = vmatpush2.bf16.msra.mxu0 0
    %368 = vmatprep.mubr.bf16.mxu0 0
    %369 = vmatmul.mubr.bf16.gmra.mxu0 %v334
    %v370 = vpop.f32.mrf.mxu0
    %v371 = vadd.f32 %v319, %v370
    %v372 = vpop.f32.mrf.mxu0
    %v373 = vpop.f32.mrf.mxu0
    %v374 = vpop.f32.mrf.mxu0
    %375 = vdwg.mxu0
    %v376 = vmax.f32 %v371, 0.0
    %v377 = vld [vmem:[#allocation10] sm:$0xf]
    %v378 = vld [vmem:[#allocation10 + $0x4] sm:$0xf]
    %v379 = vld [vmem:[#allocation10 + $0x8] sm:$0xf]
    %v380 = vld [vmem:[#allocation10 + $0xc] sm:$0xf]
    %v381 = vld [vmem:[#allocation12] sm:$0x1]
    %v382 = vpack.c.bf16 %v376, %v376
    %v384 = vlaneseq
    %v385 = vshrl.u32 %v384, 7
    %v386 = vsub.s32 0, %v385
    %v387 = vrot.slane %v381, %v386
    %v393 = vunpack.c.l.b16 %v377
    %v394 = vunpack.c.l.b16 %v378
    %v395 = vunpack.c.l.b16 %v379
    %v396 = vunpack.c.l.b16 %v380
    %v397 = vpack.c.b16 %v394, %v393
    %v398 = vpack.c.b16 %v396, %v395
    %v402 = vsel %vm150, %v382, 0
    %404 = vmatprep.subr.bf16.mxu0 0
    %405 = vmatpush1.bf16.msra.mxu0 0
    %406 = vmatprep.subr.bf16.mxu0 0
    %407 = vmatpush1.bf16.msra.mxu0 0
    %408 = vmatprep.subr.bf16.mxu0 0
    %409 = vmatpush1.bf16.msra.mxu0 0
    %410 = vmatprep.subr.bf16.mxu0 0
    %411 = vmatpush1.bf16.msra.mxu0 0
    %412 = vmatprep.subr.bf16.mxu0 0
    %413 = vmatpush1.bf16.msra.mxu0 0
    %414 = vmatprep.subr.bf16.mxu0 0
    %415 = vmatpush1.bf16.msra.mxu0 0
    %416 = vmatprep.subr.bf16.mxu0 0
    %417 = vmatpush1.bf16.msra.mxu0 %v398
    %418 = vmatprep.subr.bf16.mxu0 0
    %419 = vmatpush1.bf16.msra.mxu0 %v397
    %420 = vmatprep.subr.bf16.mxu0 0
    %421 = vmatpush2.bf16.msra.mxu0 0
    %422 = vmatprep.subr.bf16.mxu0 0
    %423 = vmatpush2.bf16.msra.mxu0 0
    %424 = vmatprep.subr.bf16.mxu0 0
    %425 = vmatpush2.bf16.msra.mxu0 0
    %426 = vmatprep.subr.bf16.mxu0 0
    %427 = vmatpush2.bf16.msra.mxu0 0
    %428 = vmatprep.subr.bf16.mxu0 0
    %429 = vmatpush2.bf16.msra.mxu0 0
    %430 = vmatprep.subr.bf16.mxu0 0
    %431 = vmatpush2.bf16.msra.mxu0 0
    %432 = vmatprep.subr.bf16.mxu0 0
    %433 = vmatpush2.bf16.msra.mxu0 0
    %434 = vmatprep.subr.bf16.mxu0 0
    %435 = vmatpush2.bf16.msra.mxu0 0
    %436 = vmatprep.mubr.bf16.mxu0 0
    %437 = vmatmul.mubr.bf16.gmra.mxu0 %v402
    %v438 = vpop.f32.mrf.mxu0
    %v439 = vadd.f32 %v387, %v438
    %v440 = vpop.f32.mrf.mxu0
    %v441 = vpop.f32.mrf.mxu0
    %v442 = vpop.f32.mrf.mxu0
    %443 = vdwg.mxu0
    %v444 = vmul.f32 %v439, 0.5
    %v445 = vmul.f32 %v444, 1.442695
    %v446 = vpow.pop %v445
    %v447 = vld [vmem:[%s1] sm:$0xff]
    %449 = vrot.lane.b32.xlu0 %v447, 16
    %v450 = vpop.permute.xlu0 %449
    %v452 = vmul.f32 %v446, %v450
    %454 = vrot.lane.b32.xlu0 %v452, 112
    %v455 = vpop.permute.xlu0 %454
    %v457 = vadd.f32 %v439, %v455
    %s458 = scalar_lea.vmem [#allocation2], 8
    %v459 = vld [vmem:[%s458] sm:$0xff]
    %v460 = vsel %vm150, %v459, 0.0
    %v461 = vrot.slane %v460, 4
    %v462 = vadd.f32 %v460, %v461
    %v463 = vrot.slane %v462, 2
    %v464 = vadd.f32 %v462, %v463
    %v465 = vrot.slane %v464, 1
    %v466 = vadd.f32 %v464, %v465
    %v467 = vmul.f32 %v466, %v158
    %v468 = vsub.f32 %v459, %v467
    %v469 = vmul.f32 %v468, %v468
    %v470 = vsel %vm150, %v469, 0.0
    %v471 = vrot.slane %v470, 4
    %v472 = vadd.f32 %v470, %v471
    %v473 = vrot.slane %v472, 2
    %v474 = vadd.f32 %v472, %v473
    %v475 = vrot.slane %v474, 1
    %v476 = vadd.f32 %v474, %v475
    %v477 = vmul.f32 %v476, %v158
    %v478 = vadd.f32 %v477, 1e-05
    %v479 = vrsqrt.pop %v478
    %v480 = vmul.f32 %v468, %v479
    %s481 = scalar_lea.vmem %s2, 16
    %v482 = vld [vmem:[%s481] sm:$0xf]
    %v483 = vld [vmem:[%s481 + $0x4] sm:$0xf]
    %v484 = vld [vmem:[%s481 + $0x8] sm:$0xf]
    %v485 = vld [vmem:[%s481 + $0xc] sm:$0xf]
    %s486 = scalar_lea.vmem [#allocation4], 1
    %v487 = vld [vmem:[%s486] sm:$0x1]
    %v488 = vpack.c.bf16 %v480, %v480
    %v490 = vlaneseq
    %v491 = vshrl.u32 %v490, 7
    %v492 = vsub.s32 0, %v491
    %v493 = vrot.slane %v487, %v492
    %v499 = vunpack.c.l.b16 %v482
    %v500 = vunpack.c.l.b16 %v483
    %v501 = vunpack.c.l.b16 %v484
    %v502 = vunpack.c.l.b16 %v485
    %v503 = vpack.c.b16 %v500, %v499
    %v504 = vpack.c.b16 %v502, %v501
    %v508 = vsel %vm150, %v488, 0
    %510 = vmatprep.subr.bf16.mxu0 0
    %511 = vmatpush1.bf16.msra.mxu0 0
    %512 = vmatprep.subr.bf16.mxu0 0
    %513 = vmatpush1.bf16.msra.mxu0 0
    %514 = vmatprep.subr.bf16.mxu0 0
    %515 = vmatpush1.bf16.msra.mxu0 0
    %516 = vmatprep.subr.bf16.mxu0 0
    %517 = vmatpush1.bf16.msra.mxu0 0
    %518 = vmatprep.subr.bf16.mxu0 0
    %519 = vmatpush1.bf16.msra.mxu0 0
    %520 = vmatprep.subr.bf16.mxu0 0
    %521 = vmatpush1.bf16.msra.mxu0 0
    %522 = vmatprep.subr.bf16.mxu0 0
    %523 = vmatpush1.bf16.msra.mxu0 %v504
    %524 = vmatprep.subr.bf16.mxu0 0
    %525 = vmatpush1.bf16.msra.mxu0 %v503
    %526 = vmatprep.subr.bf16.mxu0 0
    %527 = vmatpush2.bf16.msra.mxu0 0
    %528 = vmatprep.subr.bf16.mxu0 0
    %529 = vmatpush2.bf16.msra.mxu0 0
    %530 = vmatprep.subr.bf16.mxu0 0
    %531 = vmatpush2.bf16.msra.mxu0 0
    %532 = vmatprep.subr.bf16.mxu0 0
    %533 = vmatpush2.bf16.msra.mxu0 0
    %534 = vmatprep.subr.bf16.mxu0 0
    %535 = vmatpush2.bf16.msra.mxu0 0
    %536 = vmatprep.subr.bf16.mxu0 0
    %537 = vmatpush2.bf16.msra.mxu0 0
    %538 = vmatprep.subr.bf16.mxu0 0
    %539 = vmatpush2.bf16.msra.mxu0 0
    %540 = vmatprep.subr.bf16.mxu0 0
    %541 = vmatpush2.bf16.msra.mxu0 0
    %542 = vmatprep.mubr.bf16.mxu0 0
    %543 = vmatmul.mubr.bf16.gmra.mxu0 %v508
    %v544 = vpop.f32.mrf.mxu0
    %v545 = vadd.f32 %v493, %v544
    %v546 = vpop.f32.mrf.mxu0
    %v547 = vpop.f32.mrf.mxu0
    %v548 = vpop.f32.mrf.mxu0
    %549 = vdwg.mxu0
    %v550 = vmax.f32 %v545, 0.0
    %s551 = scalar_lea.vmem %s4, 16
    %v552 = vld [vmem:[%s551] sm:$0xf]
    %v553 = vld [vmem:[%s551 + $0x4] sm:$0xf]
    %v554 = vld [vmem:[%s551 + $0x8] sm:$0xf]
    %v555 = vld [vmem:[%s551 + $0xc] sm:$0xf]
    %s556 = scalar_lea.vmem [#allocation6], 1
    %v557 = vld [vmem:[%s556] sm:$0x1]
    %v558 = vpack.c.bf16 %v550, %v550
    %v560 = vlaneseq
    %v561 = vshrl.u32 %v560, 7
    %v562 = vsub.s32 0, %v561
    %v563 = vrot.slane %v557, %v562
    %v569 = vunpack.c.l.b16 %v552
    %v570 = vunpack.c.l.b16 %v553
    %v571 = vunpack.c.l.b16 %v554
    %v572 = vunpack.c.l.b16 %v555
    %v573 = vpack.c.b16 %v570, %v569
    %v574 = vpack.c.b16 %v572, %v571
    %v578 = vsel %vm150, %v558, 0
    %580 = vmatprep.subr.bf16.mxu0 0
    %581 = vmatpush1.bf16.msra.mxu0 0
    %582 = vmatprep.subr.bf16.mxu0 0
    %583 = vmatpush1.bf16.msra.mxu0 0
    %584 = vmatprep.subr.bf16.mxu0 0
    %585 = vmatpush1.bf16.msra.mxu0 0
    %586 = vmatprep.subr.bf16.mxu0 0
    %587 = vmatpush1.bf16.msra.mxu0 0
    %588 = vmatprep.subr.bf16.mxu0 0
    %589 = vmatpush1.bf16.msra.mxu0 0
    %590 = vmatprep.subr.bf16.mxu0 0
    %591 = vmatpush1.bf16.msra.mxu0 0
    %592 = vmatprep.subr.bf16.mxu0 0
    %593 = vmatpush1.bf16.msra.mxu0 %v574
    %594 = vmatprep.subr.bf16.mxu0 0
    %595 = vmatpush1.bf16.msra.mxu0 %v573
    %596 = vmatprep.subr.bf16.mxu0 0
    %597 = vmatpush2.bf16.msra.mxu0 0
    %598 = vmatprep.subr.bf16.mxu0 0
    %599 = vmatpush2.bf16.msra.mxu0 0
    %600 = vmatprep.subr.bf16.mxu0 0
    %601 = vmatpush2.bf16.msra.mxu0 0
    %602 = vmatprep.subr.bf16.mxu0 0
    %603 = vmatpush2.bf16.msra.mxu0 0
    %604 = vmatprep.subr.bf16.mxu0 0
    %605 = vmatpush2.bf16.msra.mxu0 0
    %606 = vmatprep.subr.bf16.mxu0 0
    %607 = vmatpush2.bf16.msra.mxu0 0
    %608 = vmatprep.subr.bf16.mxu0 0
    %609 = vmatpush2.bf16.msra.mxu0 0
    %610 = vmatprep.subr.bf16.mxu0 0
    %611 = vmatpush2.bf16.msra.mxu0 0
    %612 = vmatprep.mubr.bf16.mxu0 0
    %613 = vmatmul.mubr.bf16.gmra.mxu0 %v578
    %v614 = vpop.f32.mrf.mxu0
    %v615 = vadd.f32 %v563, %v614
    %v616 = vpop.f32.mrf.mxu0
    %v617 = vpop.f32.mrf.mxu0
    %v618 = vpop.f32.mrf.mxu0
    %619 = vdwg.mxu0
    %v620 = vmax.f32 %v615, 0.0
    %s621 = scalar_lea.vmem [#allocation7], 16
    %v622 = vld [vmem:[%s621] sm:$0xf]
    %v623 = vld [vmem:[%s621 + $0x4] sm:$0xf]
    %v624 = vld [vmem:[%s621 + $0x8] sm:$0xf]
    %v625 = vld [vmem:[%s621 + $0xc] sm:$0xf]
    %s626 = scalar_lea.vmem [#allocation9], 1
    %v627 = vld [vmem:[%s626] sm:$0x1]
    %v628 = vpack.c.bf16 %v620, %v620
    %v630 = vlaneseq
    %v631 = vshrl.u32 %v630, 7
    %v632 = vsub.s32 0, %v631
    %v633 = vrot.slane %v627, %v632
    %v639 = vunpack.c.l.b16 %v622
    %v640 = vunpack.c.l.b16 %v623
    %v641 = vunpack.c.l.b16 %v624
    %v642 = vunpack.c.l.b16 %v625
    %v643 = vpack.c.b16 %v640, %v639
    %v644 = vpack.c.b16 %v642, %v641
    %v648 = vsel %vm150, %v628, 0
    %650 = vmatprep.subr.bf16.mxu0 0
    %651 = vmatpush1.bf16.msra.mxu0 0
    %652 = vmatprep.subr.bf16.mxu0 0
    %653 = vmatpush1.bf16.msra.mxu0 0
    %654 = vmatprep.subr.bf16.mxu0 0
    %655 = vmatpush1.bf16.msra.mxu0 0
    %656 = vmatprep.subr.bf16.mxu0 0
    %657 = vmatpush1.bf16.msra.mxu0 0
    %658 = vmatprep.subr.bf16.mxu0 0
    %659 = vmatpush1.bf16.msra.mxu0 0
    %660 = vmatprep.subr.bf16.mxu0 0
    %661 = vmatpush1.bf16.msra.mxu0 0
    %662 = vmatprep.subr.bf16.mxu0 0
    %663 = vmatpush1.bf16.msra.mxu0 %v644
    %664 = vmatprep.subr.bf16.mxu0 0
    %665 = vmatpush1.bf16.msra.mxu0 %v643
    %666 = vmatprep.subr.bf16.mxu0 0
    %667 = vmatpush2.bf16.msra.mxu0 0
    %668 = vmatprep.subr.bf16.mxu0 0
    %669 = vmatpush2.bf16.msra.mxu0 0
    %670 = vmatprep.subr.bf16.mxu0 0
    %671 = vmatpush2.bf16.msra.mxu0 0
    %672 = vmatprep.subr.bf16.mxu0 0
    %673 = vmatpush2.bf16.msra.mxu0 0
    %674 = vmatprep.subr.bf16.mxu0 0
    %675 = vmatpush2.bf16.msra.mxu0 0
    %676 = vmatprep.subr.bf16.mxu0 0
    %677 = vmatpush2.bf16.msra.mxu0 0
    %678 = vmatprep.subr.bf16.mxu0 0
    %679 = vmatpush2.bf16.msra.mxu0 0
    %680 = vmatprep.subr.bf16.mxu0 0
    %681 = vmatpush2.bf16.msra.mxu0 0
    %682 = vmatprep.mubr.bf16.mxu0 0
    %683 = vmatmul.mubr.bf16.gmra.mxu0 %v648
    %v684 = vpop.f32.mrf.mxu0
    %v685 = vadd.f32 %v633, %v684
    %v686 = vpop.f32.mrf.mxu0
    %v687 = vpop.f32.mrf.mxu0
    %v688 = vpop.f32.mrf.mxu0
    %689 = vdwg.mxu0
    %v690 = vmax.f32 %v685, 0.0
    %s691 = scalar_lea.vmem [#allocation10], 16
    %v692 = vld [vmem:[%s691] sm:$0xf]
    %v693 = vld [vmem:[%s691 + $0x4] sm:$0xf]
    %v694 = vld [vmem:[%s691 + $0x8] sm:$0xf]
    %v695 = vld [vmem:[%s691 + $0xc] sm:$0xf]
    %s696 = scalar_lea.vmem [#allocation12], 1
    %v697 = vld [vmem:[%s696] sm:$0x1]
    %v698 = vpack.c.bf16 %v690, %v690
    %v700 = vlaneseq
    %v701 = vshrl.u32 %v700, 7
    %v702 = vsub.s32 0, %v701
    %v703 = vrot.slane %v697, %v702
    %v709 = vunpack.c.l.b16 %v692
    %v710 = vunpack.c.l.b16 %v693
    %v711 = vunpack.c.l.b16 %v694
    %v712 = vunpack.c.l.b16 %v695
    %v713 = vpack.c.b16 %v710, %v709
    %v714 = vpack.c.b16 %v712, %v711
    %v718 = vsel %vm150, %v698, 0
    %720 = vmatprep.subr.bf16.mxu0 0
    %721 = vmatpush1.bf16.msra.mxu0 0
    %722 = vmatprep.subr.bf16.mxu0 0
    %723 = vmatpush1.bf16.msra.mxu0 0
    %724 = vmatprep.subr.bf16.mxu0 0
    %725 = vmatpush1.bf16.msra.mxu0 0
    %726 = vmatprep.subr.bf16.mxu0 0
    %727 = vmatpush1.bf16.msra.mxu0 0
    %728 = vmatprep.subr.bf16.mxu0 0
    %729 = vmatpush1.bf16.msra.mxu0 0
    %730 = vmatprep.subr.bf16.mxu0 0
    %731 = vmatpush1.bf16.msra.mxu0 0
    %732 = vmatprep.subr.bf16.mxu0 0
    %733 = vmatpush1.bf16.msra.mxu0 %v714
    %734 = vmatprep.subr.bf16.mxu0 0
    %735 = vmatpush1.bf16.msra.mxu0 %v713
    %736 = vmatprep.subr.bf16.mxu0 0
    %737 = vmatpush2.bf16.msra.mxu0 0
    %738 = vmatprep.subr.bf16.mxu0 0
    %739 = vmatpush2.bf16.msra.mxu0 0
    %740 = vmatprep.subr.bf16.mxu0 0
    %741 = vmatpush2.bf16.msra.mxu0 0
    %742 = vmatprep.subr.bf16.mxu0 0
    %743 = vmatpush2.bf16.msra.mxu0 0
    %744 = vmatprep.subr.bf16.mxu0 0
    %745 = vmatpush2.bf16.msra.mxu0 0
    %746 = vmatprep.subr.bf16.mxu0 0
    %747 = vmatpush2.bf16.msra.mxu0 0
    %748 = vmatprep.subr.bf16.mxu0 0
    %749 = vmatpush2.bf16.msra.mxu0 0
    %750 = vmatprep.subr.bf16.mxu0 0
    %751 = vmatpush2.bf16.msra.mxu0 0
    %752 = vmatprep.mubr.bf16.mxu0 0
    %753 = vmatmul.mubr.bf16.gmra.mxu0 %v718
    %v754 = vpop.f32.mrf.mxu0
    %v755 = vadd.f32 %v703, %v754
    %v756 = vpop.f32.mrf.mxu0
    %v757 = vpop.f32.mrf.mxu0
    %v758 = vpop.f32.mrf.mxu0
    %759 = vdwg.mxu0
    %v760 = vmul.f32 %v755, 0.5
    %v761 = vmul.f32 %v760, 1.442695
    %v762 = vpow.pop %v761
    %s763 = scalar_lea.vmem %s1, 8
    %v764 = vld [vmem:[%s763] sm:$0xff]
    %766 = vrot.lane.b32.xlu0 %v764, 16
    %v767 = vpop.permute.xlu0 %766
    %v769 = vmul.f32 %v762, %v767
    %771 = vrot.lane.b32.xlu0 %v769, 112
    %v772 = vpop.permute.xlu0 %771
    %v774 = vadd.f32 %v755, %v772
    %v775 = vld [vmem:[%s10] sm:$0xf]
    %v776 = vld [vmem:[%s10 + $0x4] sm:$0xf]
    %v777 = vld [vmem:[%s11] sm:$0x1]
    %v778 = vpack.c.bf16 %v774, %v457
    %v780 = vlaneseq
    %v781 = vshrl.u32 %v780, 7
    %v782 = vsub.s32 0, %v781
    %v783 = vrot.slane %v777, %v782
    %v787 = vunpack.c.l.b16 %v775
    %v788 = vunpack.c.l.b16 %v776
    %v789 = vpack.c.b16 %v788, %v787
    %vm791 = vcmask 130048
    %v793 = vsel %vm791, %v778, 0
    %795 = vmatprep.subr.bf16.mxu0 0
    %796 = vmatpush1.bf16.msra.mxu0 0
    %797 = vmatprep.subr.bf16.mxu0 0
    %798 = vmatpush1.bf16.msra.mxu0 0
    %799 = vmatprep.subr.bf16.mxu0 0
    %800 = vmatpush1.bf16.msra.mxu0 0
    %801 = vmatprep.subr.bf16.mxu0 0
    %802 = vmatpush1.bf16.msra.mxu0 0
    %803 = vmatprep.subr.bf16.mxu0 0
    %804 = vmatpush1.bf16.msra.mxu0 0
    %805 = vmatprep.subr.bf16.mxu0 0
    %806 = vmatpush1.bf16.msra.mxu0 0
    %807 = vmatprep.subr.bf16.mxu0 0
    %808 = vmatpush1.bf16.msra.mxu0 0
    %809 = vmatprep.subr.bf16.mxu0 0
    %810 = vmatpush1.bf16.msra.mxu0 %v789
    %811 = vmatprep.subr.bf16.mxu0 0
    %812 = vmatpush2.bf16.msra.mxu0 0
    %813 = vmatprep.subr.bf16.mxu0 0
    %814 = vmatpush2.bf16.msra.mxu0 0
    %815 = vmatprep.subr.bf16.mxu0 0
    %816 = vmatpush2.bf16.msra.mxu0 0
    %817 = vmatprep.subr.bf16.mxu0 0
    %818 = vmatpush2.bf16.msra.mxu0 0
    %819 = vmatprep.subr.bf16.mxu0 0
    %820 = vmatpush2.bf16.msra.mxu0 0
    %821 = vmatprep.subr.bf16.mxu0 0
    %822 = vmatpush2.bf16.msra.mxu0 0
    %823 = vmatprep.subr.bf16.mxu0 0
    %824 = vmatpush2.bf16.msra.mxu0 0
    %825 = vmatprep.subr.bf16.mxu0 0
    %826 = vmatpush2.bf16.msra.mxu0 0
    %827 = vmatprep.mubr.bf16.mxu0 0
    %828 = vmatmul.mubr.bf16.gmra.mxu0 %v793
    %v829 = vpop.f32.mrf.mxu0
    %v830 = vadd.f32 %v783, %v829
    %v831 = vpop.f32.mrf.mxu0
    %v832 = vpop.f32.mrf.mxu0
    %v833 = vadd.f32 %v783, %v832
    %v834 = vpop.f32.mrf.mxu0
    %835 = vdwg.mxu0
    %v836 = vmax.f32 %v830, 0.0
    %v837 = vmax.f32 %v833, 0.0
    %v838 = vld [vmem:[%s12] sm:$0xf]
    %v839 = vld [vmem:[%s12 + $0x4] sm:$0xf]
    %v840 = vld [vmem:[%s13] sm:$0x1]
    %v841 = vpack.c.bf16 %v837, %v836
    %v843 = vlaneseq
    %v844 = vshrl.u32 %v843, 7
    %v845 = vsub.s32 0, %v844
    %v846 = vrot.slane %v840, %v845
    %v850 = vunpack.c.l.b16 %v838
    %v851 = vunpack.c.l.b16 %v839
    %v852 = vpack.c.b16 %v851, %v850
    %v855 = vsel %vm791, %v841, 0
    %857 = vmatprep.subr.bf16.mxu0 0
    %858 = vmatpush1.bf16.msra.mxu0 0
    %859 = vmatprep.subr.bf16.mxu0 0
    %860 = vmatpush1.bf16.msra.mxu0 0
    %861 = vmatprep.subr.bf16.mxu0 0
    %862 = vmatpush1.bf16.msra.mxu0 0
    %863 = vmatprep.subr.bf16.mxu0 0
    %864 = vmatpush1.bf16.msra.mxu0 0
    %865 = vmatprep.subr.bf16.mxu0 0
    %866 = vmatpush1.bf16.msra.mxu0 0
    %867 = vmatprep.subr.bf16.mxu0 0
    %868 = vmatpush1.bf16.msra.mxu0 0
    %869 = vmatprep.subr.bf16.mxu0 0
    %870 = vmatpush1.bf16.msra.mxu0 0
    %871 = vmatprep.subr.bf16.mxu0 0
    %872 = vmatpush1.bf16.msra.mxu0 %v852
    %873 = vmatprep.subr.bf16.mxu0 0
    %874 = vmatpush2.bf16.msra.mxu0 0
    %875 = vmatprep.subr.bf16.mxu0 0
    %876 = vmatpush2.bf16.msra.mxu0 0
    %877 = vmatprep.subr.bf16.mxu0 0
    %878 = vmatpush2.bf16.msra.mxu0 0
    %879 = vmatprep.subr.bf16.mxu0 0
    %880 = vmatpush2.bf16.msra.mxu0 0
    %881 = vmatprep.subr.bf16.mxu0 0
    %882 = vmatpush2.bf16.msra.mxu0 0
    %883 = vmatprep.subr.bf16.mxu0 0
    %884 = vmatpush2.bf16.msra.mxu0 0
    %885 = vmatprep.subr.bf16.mxu0 0
    %886 = vmatpush2.bf16.msra.mxu0 0
    %887 = vmatprep.subr.bf16.mxu0 0
    %888 = vmatpush2.bf16.msra.mxu0 0
    %889 = vmatprep.mubr.bf16.mxu0 0
    %890 = vmatmul.mubr.bf16.gmra.mxu0 %v855
    %v891 = vpop.f32.mrf.mxu0
    %v892 = vadd.f32 %v846, %v891
    %v893 = vpop.f32.mrf.mxu0
    %v894 = vpop.f32.mrf.mxu0
    %v895 = vadd.f32 %v846, %v894
    %v896 = vpop.f32.mrf.mxu0
    %897 = vdwg.mxu0
    %v898 = vmax.f32 %v892, 0.0
    %v899 = vmax.f32 %v895, 0.0
    %v900 = vld [vmem:[%s14] sm:$0xf]
    %v901 = vld [vmem:[%s14 + $0x4] sm:$0xf]
    %v902 = vld [vmem:[%s15] sm:$0x1]
    %v903 = vpack.c.bf16 %v899, %v898
    %v905 = vlaneseq
    %v906 = vshrl.u32 %v905, 7
    %v907 = vsub.s32 0, %v906
    %v908 = vrot.slane %v902, %v907
    %v912 = vunpack.c.l.b16 %v900
    %v913 = vunpack.c.l.b16 %v901
    %v914 = vpack.c.b16 %v913, %v912
    %v917 = vsel %vm791, %v903, 0
    %919 = vmatprep.subr.bf16.mxu0 0
    %920 = vmatpush1.bf16.msra.mxu0 0
    %921 = vmatprep.subr.bf16.mxu0 0
    %922 = vmatpush1.bf16.msra.mxu0 0
    %923 = vmatprep.subr.bf16.mxu0 0
    %924 = vmatpush1.bf16.msra.mxu0 0
    %925 = vmatprep.subr.bf16.mxu0 0
    %926 = vmatpush1.bf16.msra.mxu0 0
    %927 = vmatprep.subr.bf16.mxu0 0
    %928 = vmatpush1.bf16.msra.mxu0 0
    %929 = vmatprep.subr.bf16.mxu0 0
    %930 = vmatpush1.bf16.msra.mxu0 0
    %931 = vmatprep.subr.bf16.mxu0 0
    %932 = vmatpush1.bf16.msra.mxu0 0
    %933 = vmatprep.subr.bf16.mxu0 0
    %934 = vmatpush1.bf16.msra.mxu0 %v914
    %935 = vmatprep.subr.bf16.mxu0 0
    %936 = vmatpush2.bf16.msra.mxu0 0
    %937 = vmatprep.subr.bf16.mxu0 0
    %938 = vmatpush2.bf16.msra.mxu0 0
    %939 = vmatprep.subr.bf16.mxu0 0
    %940 = vmatpush2.bf16.msra.mxu0 0
    %941 = vmatprep.subr.bf16.mxu0 0
    %942 = vmatpush2.bf16.msra.mxu0 0
    %943 = vmatprep.subr.bf16.mxu0 0
    %944 = vmatpush2.bf16.msra.mxu0 0
    %945 = vmatprep.subr.bf16.mxu0 0
    %946 = vmatpush2.bf16.msra.mxu0 0
    %947 = vmatprep.subr.bf16.mxu0 0
    %948 = vmatpush2.bf16.msra.mxu0 0
    %949 = vmatprep.subr.bf16.mxu0 0
    %950 = vmatpush2.bf16.msra.mxu0 0
    %951 = vmatprep.mubr.bf16.mxu0 0
    %952 = vmatmul.mubr.bf16.gmra.mxu0 %v917
    %v953 = vpop.f32.mrf.mxu0
    %v954 = vadd.f32 %v908, %v953
    %v955 = vpop.f32.mrf.mxu0
    %v956 = vpop.f32.mrf.mxu0
    %v957 = vadd.f32 %v908, %v956
    %v958 = vpop.f32.mrf.mxu0
    %959 = vdwg.mxu0
    %v960 = vxor.u32 %v954, 2147483648
    %v961 = vxor.u32 %v957, 2147483648
    %v962 = vmul.f32 %v960, 1.442695
    %v963 = vpow.pop %v962
    %v964 = vmul.f32 %v961, 1.442695
    %v965 = vpow.pop %v964
    %v966 = vadd.f32 %v963, 1.0
    %v967 = vadd.f32 %v965, 1.0
    %v968 = vrcp.pop %v966
    %v969 = vmul.f32 1.0, %v968
    %v970 = vrcp.pop %v967
    %v971 = vmul.f32 1.0, %v970
    %974 = vrot.lane.b32.xlu0 %v457, 32
    %v975 = vpop.permute.xlu0 %974
    %976 = vrot.lane.b32.xlu0 %v774, 32
    %v977 = vpop.permute.xlu0 %976
    %982 = vrot.lane.b32.xlu0 %v969, 48
    %v983 = vpop.permute.xlu0 %982
    %984 = vrot.lane.b32.xlu0 %v971, 48
    %v985 = vpop.permute.xlu0 %984
    %v988 = vsel %vm791, %v439, %v446
    %v989 = vsel %vm791, %v755, %v762
    %v990 = vsel %vm150, %v988, %v975
    %v991 = vsel %vm150, %v989, %v977
    %vm992 = vcmask 392192
    %v993 = vsel %vm992, %v990, %v983
    %v994 = vsel %vm992, %v991, %v985
    %vm995 = vcmask 424960
    %v996 = vsel %vm995, %v993, 0.0
    %v997 = vsel %vm995, %v994, 0.0
    %998 = vst [vmem:[%s16] sm:$0xff] %v996
    %999 = vst [vmem:[%s16 + $0x8] sm:$0xff] %v997
    // Predicated region
    $region94: #{_mcvc2_fused.1} parent=1 // pred_check
      _
    $region95: #{_mcvc2_fused.1} parent=1 // pred_check_branch
      %1001 = sbr.rel (0) target = $region97
    $region96: #{_mcvc2_fused.1} parent=1 // pred_region
      _
    $region97: #{_mcvc2_fused.1} parent=1 // pred_fallthru
      _
    // Predicated region
    $region98: #{_mcvc2_fused.1} parent=1 // pred_check
      _
    $region99: #{_mcvc2_fused.1} parent=1 // pred_check_branch
      %1003 = sbr.rel (0) target = $region101
    $region100: #{_mcvc2_fused.1} parent=1 // pred_region
      _
    $region101: #{_mcvc2_fused.1} parent=1 // pred_fallthru
      _
    %1004 = vsyncpa [#allocation3], 1
    %1005 = vsyncpa [#allocation5], 1
    %1006 = vsyncpa [#allocation8], 1
    %1007 = vsyncpa [#allocation11], 1

</llo_original>
